<compile_context>
chip_gen: v7x
topology: tpu7x:2x2x1
jax: 0.10.0
libtpu: 0.0.40
codegen_flags: <defaults>
</compile_context>

<pallas_src>
import math
import re
from functools import partial

import jax
import jax.numpy as jnp
from jax.experimental import pallas as pl
from jax.experimental.pallas import tpu as pltpu


_VMEM_LIMIT = 48 * 1024 * 1024  # safe on v5e/v6e (128 MiB) and v7x (64 MiB)


# ----------------------------------------------------------------------------
# helpers
# ----------------------------------------------------------------------------
def _pick_tile(dim, target, multiple):
    """Largest tile <= target that divides dim and is a multiple of `multiple`;
    falls back to the full dim (block == full extent is always legal)."""
    if dim <= target:
        return dim
    t = (target // multiple) * multiple
    while t >= multiple:
        if dim % t == 0:
            return t
        t -= multiple
    return dim


_INT8_MM_SUPPORT = None


def _int8_matmul_supported():
    """int8 x int8 -> int32 MXU path exists on v4/v5/v6; v7x has no integer MXU.
    Decided from the device kind (no compile+execute probe at trace time)."""
    global _INT8_MM_SUPPORT
    if _INT8_MM_SUPPORT is None:
        try:
            kind = jax.devices()[0].device_kind.lower()
            m = re.search(r"(\d+)", kind)
            ver = int(m.group(1)) if m else 0
            _INT8_MM_SUPPORT = ver in (4, 5, 6)
        except Exception:
            _INT8_MM_SUPPORT = False
    return _INT8_MM_SUPPORT


# VPU rational tanh (Eigen-style coefficients, clamped): all multiplies on the
# VALU slots plus one approximate reciprocal (+1 Newton step).  Keeps the single
# EUP slot free for the softmax exp -- the attention bottleneck on v6e/v7x.
_TANH_CLAMP = 7.90531110763549
_TANH_P = (-2.76076847742355e-16, 2.00018790482477e-13, -8.60467152213735e-11,
           5.12229709037114e-08, 1.48572235717979e-05, 6.37261928875436e-04,
           4.89352455891786e-03)
_TANH_Q = (1.19825839466702e-06, 1.18534705686654e-04, 2.26843463243900e-03,
           4.89352518554385e-03)


def _tanh_vpu(x):
    x = jnp.clip(x, -_TANH_CLAMP, _TANH_CLAMP)
    x2 = x * x
    p = jnp.float32(_TANH_P[0])
    for c in _TANH_P[1:]:
        p = p * x2 + c
    p = p * x
    q = jnp.float32(_TANH_Q[0])
    for c in _TANH_Q[1:]:
        q = q * x2 + c
    r = pl.reciprocal(q, approx=True)
    r = r * (2.0 - q * r)        # one Newton step -> ~f32-accurate divide
    return p * r


# ----------------------------------------------------------------------------
# W8A8OF16LinearDynamicInputScale (generic, used for q_proj):
#   out[m, n] = (sum_k x_int8[m,k] * w_int8[n,k]) * x_scale[m] * w_scale[n]
# Weight passed pre-transposed as (K, N).
# ----------------------------------------------------------------------------
def _w8a8_matmul_kernel(x_ref, w_ref, xs_ref, ws_ref, o_ref, acc_ref, *, use_int8):
    k = pl.program_id(2)

    @pl.when(k == 0)
    def _():
        acc_ref[...] = jnp.zeros_like(acc_ref)

    if use_int8:
        acc_ref[...] += jax.lax.dot_general(
            x_ref[...], w_ref[...], (((1,), (0,)), ((), ())),
            preferred_element_type=jnp.int32)
    else:
        # v7x: bf16 operands (exact for |q| <= 127), f32 accumulation
        acc_ref[...] += jax.lax.dot_general(
            x_ref[...].astype(jnp.bfloat16), w_ref[...].astype(jnp.bfloat16),
            (((1,), (0,)), ((), ())),
            preferred_element_type=jnp.float32)

    @pl.when(k == pl.num_programs(2) - 1)
    def _():
        acc = acc_ref[...].astype(jnp.float32)
        o_ref[...] = (acc * xs_ref[...] * ws_ref[...]).astype(o_ref.dtype)


def w8a8_linear(x_q, x_scale, w_qT, w_scale, *, tm=256, tn=512, tk=1024):
    # Larger tn/tk defaults: fewer grid steps + longer weight DMAs (decode is
    # weight-bandwidth bound); still only a few MiB of VMEM per step.
    M, K = x_q.shape
    K2, N = w_qT.shape
    assert K == K2
    use_int8 = _int8_matmul_supported()
    tm = _pick_tile(M, tm, 32)
    tn = _pick_tile(N, tn, 128)
    tk = _pick_tile(K, tk, 128)
    assert M % tm == 0 and N % tn == 0 and K % tk == 0
    xs = x_scale.reshape(M, 1).astype(jnp.float32)
    ws = w_scale.reshape(1, N).astype(jnp.float32)
    acc_dtype = jnp.int32 if use_int8 else jnp.float32
    return pl.pallas_call(
        partial(_w8a8_matmul_kernel, use_int8=use_int8),
        out_shape=jax.ShapeDtypeStruct((M, N), jnp.bfloat16),
        grid=(M // tm, N // tn, K // tk),
        in_specs=[
            pl.BlockSpec((tm, tk), lambda i, j, k: (i, k)),
            pl.BlockSpec((tk, tn), lambda i, j, k: (k, j)),
            pl.BlockSpec((tm, 1), lambda i, j, k: (i, 0)),
            pl.BlockSpec((1, tn), lambda i, j, k: (0, j)),
        ],
        out_specs=pl.BlockSpec((tm, tn), lambda i, j, k: (i, j)),
        scratch_shapes=[pltpu.VMEM((tm, tn), acc_dtype)],
        compiler_params=pltpu.CompilerParams(
            dimension_semantics=("parallel", "parallel", "arbitrary"),
            vmem_limit_bytes=_VMEM_LIMIT),
    )(x_q, w_qT, xs, ws)


# ----------------------------------------------------------------------------
# K/V projection emitting head-major (B, Hkv, S, D) directly, with the K RoPE
# fused into the epilogue (so the kv cache concat keeps the reference
# rotate-then-concat order and the attention kernel never touches K RoPE).
# ----------------------------------------------------------------------------
def _w8a8_kv_kernel(x_ref, wk_ref, wv_ref, xs_ref, wks_ref, wvs_ref,
                    cos_ref, sin_ref, k_ref, v_ref, acck_ref, accv_ref,
                    *, use_int8):
    kk = pl.program_id(2)

    @pl.when(kk == 0)
    def _():
        acck_ref[...] = jnp.zeros_like(acck_ref)
        accv_ref[...] = jnp.zeros_like(accv_ref)

    if use_int8:
        x = x_ref[...]
        acck_ref[...] += jax.lax.dot_general(
            x, wk_ref[...], (((1,), (0,)), ((), ())),
            preferred_element_type=jnp.int32)
        accv_ref[...] += jax.lax.dot_general(
            x, wv_ref[...], (((1,), (0,)), ((), ())),
            preferred_element_type=jnp.int32)
    else:
        x = x_ref[...].astype(jnp.bfloat16)
        acck_ref[...] += jax.lax.dot_general(
            x, wk_ref[...].astype(jnp.bfloat16), (((1,), (0,)), ((), ())),
            preferred_element_type=jnp.float32)
        accv_ref[...] += jax.lax.dot_general(
            x, wv_ref[...].astype(jnp.bfloat16), (((1,), (0,)), ((), ())),
            preferred_element_type=jnp.float32)

    @pl.when(kk == pl.num_programs(2) - 1)
    def _():
        xs = xs_ref[...]
        kacc = acck_ref[...].astype(jnp.float32) * xs * wks_ref[...]   # (tm, D)
        # NeoX half-rotation: x*cos + roll(x, D/2)*[-sin, sin]
        half = kacc.shape[-1] // 2
        kacc = kacc * cos_ref[0] + pltpu.roll(kacc, shift=half, axis=1) * sin_ref[0]
        k_ref[0, 0] = kacc.astype(k_ref.dtype)
        vacc = accv_ref[...].astype(jnp.float32) * xs * wvs_ref[...]
        v_ref[0, 0] = vacc.astype(v_ref.dtype)


def w8a8_kv_proj(x_q, x_scale, wk_qT, wk_scale, wv_qT, wv_scale, cos, sin,
                 *, bsz, seqlen, num_kv_heads, head_dim, tm=256, tk=1024):
    M, K = x_q.shape
    kv_dim = num_kv_heads * head_dim
    assert M == bsz * seqlen
    assert wk_qT.shape == (K, kv_dim) and wv_qT.shape == (K, kv_dim)
    use_int8 = _int8_matmul_supported()
    # int8 activation tiles must be 32-row aligned (or span the full M axis).
    # TODO(synk): pad unaligned seqlen (e.g. single-token decode) instead of
    # asserting; decode reads K/V mostly from the cache anyway.
    tm = _pick_tile(seqlen, tm, 32)
    assert seqlen % tm == 0 and (tm % 32 == 0 or tm == M), (
        "kv_proj fused layout requires seqlen % 32 == 0 (or bsz == 1)")
    tk = _pick_tile(K, tk, 128)
    assert K % tk == 0
    s_blocks = seqlen // tm
    xs = x_scale.reshape(M, 1).astype(jnp.float32)
    wks = wk_scale.reshape(1, kv_dim).astype(jnp.float32)
    wvs = wv_scale.reshape(1, kv_dim).astype(jnp.float32)
    acc_dtype = jnp.int32 if use_int8 else jnp.float32
    out_sd = jax.ShapeDtypeStruct((bsz, num_kv_heads, seqlen, head_dim), jnp.bfloat16)
    return pl.pallas_call(
        partial(_w8a8_kv_kernel, use_int8=use_int8),
        out_shape=(out_sd, out_sd),
        grid=(M // tm, num_kv_heads, K // tk),
        in_specs=[
            pl.BlockSpec((tm, tk), lambda i, h, kk: (i, kk)),
            pl.BlockSpec((tk, head_dim), lambda i, h, kk: (kk, h)),
            pl.BlockSpec((tk, head_dim), lambda i, h, kk: (kk, h)),
            pl.BlockSpec((tm, 1), lambda i, h, kk: (i, 0)),
            pl.BlockSpec((1, head_dim), lambda i, h, kk: (0, h)),
            pl.BlockSpec((1, head_dim), lambda i, h, kk: (0, h)),
            pl.BlockSpec((1, tm, head_dim),
                         lambda i, h, kk: (i // s_blocks, i % s_blocks, 0)),
            pl.BlockSpec((1, tm, head_dim),
                         lambda i, h, kk: (i // s_blocks, i % s_blocks, 0)),
        ],
        out_specs=(
            pl.BlockSpec((1, 1, tm, head_dim),
                         lambda i, h, kk: (i // s_blocks, h, i % s_blocks, 0)),
            pl.BlockSpec((1, 1, tm, head_dim),
                         lambda i, h, kk: (i // s_blocks, h, i % s_blocks, 0)),
        ),
        scratch_shapes=[pltpu.VMEM((tm, head_dim), acc_dtype),
                        pltpu.VMEM((tm, head_dim), acc_dtype)],
        compiler_params=pltpu.CompilerParams(
            dimension_semantics=("parallel", "parallel", "arbitrary"),
            vmem_limit_bytes=_VMEM_LIMIT),
    )(x_q, wk_qT, wv_qT, xs, wks, wvs, cos, sin)


# ----------------------------------------------------------------------------
# Fused invoke_quant + out_proj:
#   per-token: absmax -> inv = 127/absmax (one small reciprocal, VPU multiply
#   over the tile), q = clip(round(x*inv)); quantized once per M tile (j == 0)
#   into VMEM scratch and reused for every N tile.
# ----------------------------------------------------------------------------
def _quant_w8a8_matmul_kernel(x_ref, w_ref, ws_ref, o_ref, xq_ref, xs_ref, *, use_int8):
    j = pl.program_id(1)

    @pl.when(j == 0)
    def _():
        x = x_ref[...].astype(jnp.float32)
        absmax = jnp.maximum(jnp.max(jnp.abs(x), axis=-1, keepdims=True), 1e-5)
        inv = 127.0 / absmax
        xq_ref[...] = jnp.clip(jnp.round(x * inv), -127.0, 127.0).astype(xq_ref.dtype)
        xs_ref[...] = absmax * (1.0 / 127.0)

    if use_int8:
        acc = jax.lax.dot_general(
            xq_ref[...], w_ref[...], (((1,), (0,)), ((), ())),
            preferred_element_type=jnp.int32).astype(jnp.float32)
    else:
        acc = jax.lax.dot_general(
            xq_ref[...], w_ref[...].astype(jnp.bfloat16),
            (((1,), (0,)), ((), ())),
            preferred_element_type=jnp.float32)
    o_ref[...] = (acc * xs_ref[...] * ws_ref[...]).astype(o_ref.dtype)


def quant_w8a8_linear(x, w_qT, w_scale, *, tm=128, tn=512):
    # tm=128 + explicit vmem limit keeps the whole-K-resident activation,
    # int8 scratch copy and double-buffered weight blocks comfortably inside
    # v7x's 64 MiB (and raises v5e's 16 MiB scoped default).
    M, K = x.shape
    K2, N = w_qT.shape
    assert K == K2
    use_int8 = _int8_matmul_supported()
    tm = _pick_tile(M, tm, 16)
    tn = _pick_tile(N, tn, 128)
    assert M % tm == 0 and N % tn == 0
    ws = w_scale.reshape(1, N).astype(jnp.float32)
    q_dtype = jnp.int8 if use_int8 else jnp.bfloat16
    return pl.pallas_call(
        partial(_quant_w8a8_matmul_kernel, use_int8=use_int8),
        out_shape=jax.ShapeDtypeStruct((M, N), jnp.bfloat16),
        grid=(M // tm, N // tn),
        in_specs=[
            pl.BlockSpec((tm, K), lambda i, j: (i, 0)),   # resident across j
            pl.BlockSpec((K, tn), lambda i, j: (0, j)),
            pl.BlockSpec((1, tn), lambda i, j: (0, j)),
        ],
        out_specs=pl.BlockSpec((tm, tn), lambda i, j: (i, j)),
        scratch_shapes=[pltpu.VMEM((tm, K), q_dtype),
                        pltpu.VMEM((tm, 1), jnp.float32)],
        compiler_params=pltpu.CompilerParams(
            dimension_semantics=("parallel", "arbitrary"),
            vmem_limit_bytes=_VMEM_LIMIT),
    )(x, w_qT, ws)


# ----------------------------------------------------------------------------
# Standalone dynamic per-token int8 quantization (builds the demo's
# pre-quantized ActivationBuffer input).
# ----------------------------------------------------------------------------
def _dynamic_quant_kernel(x_ref, q_ref, s_ref):
    x = x_ref[...].astype(jnp.float32)
    absmax = jnp.maximum(jnp.max(jnp.abs(x), axis=-1, keepdims=True), 1e-5)
    inv = 127.0 / absmax
    q_ref[...] = jnp.clip(jnp.round(x * inv), -127.0, 127.0).astype(jnp.int8)
    s_ref[...] = absmax * (1.0 / 127.0)


def dynamic_quant(x, *, tm=512):
    M, H = x.shape
    tm = _pick_tile(M, tm, 8)
    assert M % tm == 0
    q, s = pl.pallas_call(
        _dynamic_quant_kernel,
        out_shape=(jax.ShapeDtypeStruct((M, H), jnp.int8),
                   jax.ShapeDtypeStruct((M, 1), jnp.float32)),
        grid=(M // tm,),
        in_specs=[pl.BlockSpec((tm, H), lambda i: (i, 0))],
        out_specs=(pl.BlockSpec((tm, H), lambda i: (i, 0)),
                   pl.BlockSpec((tm, 1), lambda i: (i, 0))),
        compiler_params=pltpu.CompilerParams(dimension_semantics=("parallel",)),
    )(x)
    return q, s.reshape(M)


# ----------------------------------------------------------------------------
# Flash attention, fused Q-RoPE, GQA via in-kernel head loop, softcap=50,
# masked-tile skipping, reading/writing the (B*S, H*D) slab directly.
# ----------------------------------------------------------------------------
def _attn_kernel(live_ref, q_ref, k_ref, v_ref, cq_ref, sq_ref, mask_ref,
                 o_ref, qrot_ref, m_ref, l_ref, acc_ref,
                 *, sm_scale, softcap, groups, head_dim):
    ki = pl.program_id(3)
    D = head_dim

    @pl.when(ki == 0)
    def _init():
        m_ref[...] = jnp.full_like(m_ref, -1e30)
        l_ref[...] = jnp.zeros_like(l_ref)
        acc_ref[...] = jnp.zeros_like(acc_ref)
        # Q RoPE once per (batch, kv-head, q-tile): XLU roll + VPU multiplies.
        cq = cq_ref[0]                                        # (tq, D) f32
        sq = sq_ref[0]
        for g in range(groups):
            qg = q_ref[:, g * D:(g + 1) * D].astype(jnp.float32)
            qg = qg * cq + pltpu.roll(qg, shift=D // 2, axis=1) * sq
            qrot_ref[g] = qg.astype(qrot_ref.dtype)

    # Skip all MXU / VPU / EUP work on KV tiles the mask fully drops.
    @pl.when(live_ref[ki] > 0)
    def _step():
        kt = k_ref[0, 0]                                      # (tkv, D) bf16
        v = v_ref[0, 0]
        masked = mask_ref[...] <= -65000.0                    # (1, tkv)
        for g in range(groups):
            qg = qrot_ref[g]                                  # (tq, D) bf16
            s = jax.lax.dot_general(
                qg, kt, (((1,), (1,)), ((), ())),
                preferred_element_type=jnp.float32)           # (tq, tkv)
            if softcap:
                s = softcap * _tanh_vpu(s * (sm_scale / softcap))
            else:
                s = s * sm_scale
            s = jnp.where(masked, -1e30, s)
            m_prev = m_ref[g]
            m_new = jnp.maximum(m_prev, jnp.max(s, axis=-1, keepdims=True))
            alpha = jnp.exp(m_prev - m_new)
            p = jnp.exp(s - m_new)
            p = jnp.where(masked, 0.0, p)                     # exact exclusion
            l_ref[g] = alpha * l_ref[g] + jnp.sum(p, axis=-1, keepdims=True)
            acc_ref[g] = alpha * acc_ref[g] + jax.lax.dot_general(
                p.astype(v.dtype), v, (((1,), (0,)), ((), ())),
                preferred_element_type=jnp.float32)
            m_ref[g] = m_new

    @pl.when(ki == pl.num_programs(3) - 1)
    def _fin():
        for g in range(groups):
            l = l_ref[g]
            inv = jnp.where(l > 0.0, 1.0 / l, 0.0)            # exact; 0 if all-masked
            o_ref[:, g * D:(g + 1) * D] = (acc_ref[g] * inv).astype(o_ref.dtype)


def flash_attention_fused(q_slab, k4, v4, cos, sin, mask_vec,
                          *, bsz, seqlen, groups, softcap,
                          tq_target=256, tkv_target=2048):
    # q_slab: (B*S, H*D) bf16 (un-rotated); k4/v4: (B, Hkv, Skv, D) bf16
    # (K already rotated); cos/sin: (B, S, D) f32; mask_vec: (1, Skv) f32.
    M, q_dim = q_slab.shape
    B, Hkv, Skv, D = k4.shape
    assert M == bsz * seqlen and q_dim == Hkv * groups * D
    assert D % 128 == 0, "head_dim must be a multiple of 128"  # TODO(synk): pad smaller head_dim
    assert mask_vec.shape == (1, Skv)
    sm_scale = 1.0 / math.sqrt(D)
    # bf16 slab tiles need 16-row alignment unless they span all of M.
    # TODO(synk): pad / fall back for unaligned decode shapes.
    tq = _pick_tile(seqlen, tq_target, 16)
    assert seqlen % tq == 0 and (tq % 16 == 0 or tq == M), (
        "fused attention layout requires seqlen % 16 == 0 (or bsz == 1)")
    tkv = _pick_tile(Skv, tkv_target, 128)
    n_kv = Skv // tkv
    nq = seqlen // tq
    # Per-KV-tile liveness flags (scalar-prefetched) -> skip fully-masked tiles.
    kv_live = jnp.any(mask_vec.reshape(n_kv, tkv) > -65000.0, axis=1).astype(jnp.int32)

    kernel = partial(_attn_kernel, sm_scale=sm_scale, softcap=softcap,
                     groups=groups, head_dim=D)
    return pl.pallas_call(
        kernel,
        out_shape=jax.ShapeDtypeStruct((M, q_dim), jnp.bfloat16),
        grid_spec=pltpu.PrefetchScalarGridSpec(
            num_scalar_prefetch=1,
            grid=(B, Hkv, nq, n_kv),
            in_specs=[
                pl.BlockSpec((tq, groups * D),
                             lambda b, h, qi, ki, live: (b * nq + qi, h)),
                pl.BlockSpec((1, 1, tkv, D),
                             lambda b, h, qi, ki, live: (b, h, ki, 0)),
                pl.BlockSpec((1, 1, tkv, D),
                             lambda b, h, qi, ki, live: (b, h, ki, 0)),
                pl.BlockSpec((1, tq, D),
                             lambda b, h, qi, ki, live: (b, qi, 0)),
                pl.BlockSpec((1, tq, D),
                             lambda b, h, qi, ki, live: (b, qi, 0)),
                pl.BlockSpec((1, tkv),
                             lambda b, h, qi, ki, live: (0, ki)),
            ],
            out_specs=pl.BlockSpec((tq, groups * D),
                                   lambda b, h, qi, ki, live: (b * nq + qi, h)),
            scratch_shapes=[pltpu.VMEM((groups, tq, D), jnp.bfloat16),   # rotated Q
                            pltpu.VMEM((groups, tq, 1), jnp.float32),    # m
                            pltpu.VMEM((groups, tq, 1), jnp.float32),    # l
                            pltpu.VMEM((groups, tq, D), jnp.float32)]),  # acc
        compiler_params=pltpu.CompilerParams(
            dimension_semantics=("parallel", "parallel", "parallel", "arbitrary"),
            vmem_limit_bytes=_VMEM_LIMIT),
    )(kv_live, q_slab, k4, v4, cos, sin, mask_vec)


# ----------------------------------------------------------------------------
# RoPE cos/sin tables (tiny; the rotation itself is fused into the kernels).
# ----------------------------------------------------------------------------
def _rope_tables(freqs, *, bsz, seqlen, head_dim):
    # TODO(synk): NeoX-style half rotation assumed for awq fused RoPE; validate
    # the exact interleave convention against awq_inference_engine.
    if freqs is None:
        cos = jnp.ones((bsz, seqlen, head_dim // 2), jnp.float32)
        sin = jnp.zeros((bsz, seqlen, head_dim // 2), jnp.float32)
    else:
        f = freqs.astype(jnp.float32)
        cos, sin = jnp.cos(f), jnp.sin(f)
    cos_f = jnp.concatenate([cos, cos], axis=-1)         # (B, S, D)
    sin_f = jnp.concatenate([-sin, sin], axis=-1)        # sign pattern for roll rotation
    return cos_f, sin_f


# ----------------------------------------------------------------------------
# Full QuantMixtureAttention2.forward
# ----------------------------------------------------------------------------
def quant_mixture_attention2_forward(x_q, x_scale, params, *, bsz, seqlen,
                                     num_heads, num_kv_heads, head_dim,
                                     freqs=None, mask=None,
                                     kv_cache_vlm=None, kv_cache_proprio=None,
                                     attn_softclamp=50.0):
    groups = num_heads // num_kv_heads

    cos, sin = _rope_tables(freqs, bsz=bsz, seqlen=seqlen, head_dim=head_dim)

    # 1) projections straight into the layouts the attention kernel consumes:
    #    q  -> (B*S, H*D) slab (also the attention-output / out_proj layout)
    #    k/v-> (B, Hkv, S, D) head-major, K RoPE fused into the epilogue.
    q_slab = w8a8_linear(x_q, x_scale, params["wq_qT"], params["wq_scale"])
    k_new, v_new = w8a8_kv_proj(x_q, x_scale,
                                params["wk_qT"], params["wk_scale"],
                                params["wv_qT"], params["wv_scale"],
                                cos, sin,
                                bsz=bsz, seqlen=seqlen,
                                num_kv_heads=num_kv_heads, head_dim=head_dim)

    # 2) kv-cache concat (cache already rotated; new K rotated above, so the
    #    reference rotate-then-concat order is preserved).
    # TODO(synk): replace with an in-kernel segment walk (scalar-prefetched
    # segment lengths + manual double-buffered DMA) to avoid re-materializing
    # the whole cache each step.
    if kv_cache_vlm is not None:
        k = jnp.concatenate([kv_cache_vlm[0], kv_cache_proprio[0], k_new], axis=2)
        v = jnp.concatenate([kv_cache_vlm[1], kv_cache_proprio[1], v_new], axis=2)
    else:
        k, v = k_new, v_new
    skv = k.shape[2]

    if mask is not None:
        mask_vec = mask[0, 0, 0].reshape(1, -1).astype(jnp.float32)
    else:
        mask_vec = jnp.zeros((1, skv), jnp.float32)

    # 3) fused (Q-RoPE + GQA-folded) flash attention -> already (B*S, H*D)
    attn = flash_attention_fused(q_slab, k, v, cos, sin, mask_vec,
                                 bsz=bsz, seqlen=seqlen, groups=groups,
                                 softcap=attn_softclamp)

    # 4+5) fused invoke_quant + out_proj (W8A8 -> bf16)
    return quant_w8a8_linear(attn, params["wo_qT"], params["wo_scale"])


if __name__ == "__main__":
    bsz, seqlen = 2, 32
    num_heads, num_kv_heads, head_dim = 2, 1, 128
    hidden = num_heads * head_dim            # 256
    q_dim = num_heads * head_dim             # 256
    kv_dim = num_kv_heads * head_dim         # 128
    qkv_out = q_dim + 2 * kv_dim             # 512

    key = jax.random.PRNGKey(0)
    k0, k1, k2, k3, k4 = jax.random.split(key, 5)

    # Deterministic "buffer" input: quantized hidden states + per-token scales.
    x_fp = jax.random.normal(k0, (bsz * seqlen, hidden), jnp.float32)
    x_q, x_scale = dynamic_quant(x_fp)

    # Deterministic int8 weights (PyTorch (N, K) layout) + per-channel scales.
    wqkv_q = jax.random.randint(k1, (qkv_out, hidden), -127, 128, jnp.int32).astype(jnp.int8)
    wqkv_scale = jax.random.uniform(k2, (qkv_out,), jnp.float32) * 0.02 + 1e-3
    wo_q = jax.random.randint(k3, (hidden, q_dim), -127, 128, jnp.int32).astype(jnp.int8)
    wo_scale = jax.random.uniform(k4, (hidden,), jnp.float32) * 0.02 + 1e-3

    # Weights pre-transposed to (K, N); the fused qkv weight is split into its
    # q / k / v slices so each projection writes its consumer's layout directly.
    params = dict(
        wq_qT=jnp.transpose(wqkv_q[:q_dim]),
        wq_scale=wqkv_scale[:q_dim],
        wk_qT=jnp.transpose(wqkv_q[q_dim:q_dim + kv_dim]),
        wk_scale=wqkv_scale[q_dim:q_dim + kv_dim],
        wv_qT=jnp.transpose(wqkv_q[q_dim + kv_dim:]),
        wv_scale=wqkv_scale[q_dim + kv_dim:],
        wo_qT=jnp.transpose(wo_q),
        wo_scale=wo_scale,
    )

    # RoPE angles (positions * inverse frequencies), shape (B, S, D//2).
    pos = jnp.arange(seqlen, dtype=jnp.float32)[None, :, None]
    inv_freq = 1.0 / (10000.0 ** (jnp.arange(0, head_dim // 2, dtype=jnp.float32)
                                  / (head_dim // 2)))
    freqs = jnp.broadcast_to(pos * inv_freq[None, None, :],
                             (bsz, seqlen, head_dim // 2))

    # Mask in the module's convention: -65504 marks kv positions to drop.
    mask = jnp.zeros((1, 1, 1, seqlen), jnp.float32).at[..., -2:].set(-65504.0)

    out = quant_mixture_attention2_forward(
        x_q, x_scale, params,
        bsz=bsz, seqlen=seqlen,
        num_heads=num_heads, num_kv_heads=num_kv_heads, head_dim=head_dim,
        freqs=freqs, mask=mask,
        kv_cache_vlm=None, kv_cache_proprio=None)
    out = jax.block_until_ready(out)

    assert out.shape == (bsz * seqlen, hidden), out.shape
    assert bool(jnp.all(jnp.isfinite(out.astype(jnp.float32))))
    print("KERNEL_OK")
</pallas_src>

<mosaic_0001>
module attributes {stable_mosaic.version = 11 : i64} {
  func.func @_dynamic_quant_kernel(%arg0: i32, %arg1: memref<64x256xf32, #tpu.memory_space<vmem>>, %arg2: memref<64x256xi8, #tpu.memory_space<vmem>>, %arg3: memref<64x1xf32, #tpu.memory_space<vmem>>) attributes {dimension_semantics = [#tpu.dimension_semantics<parallel>], iteration_bounds = array<i64: 1>, scalar_prefetch = 0 : i64, scratch_operands = 0 : i64, tpu.core_type = #tpu.core_type<tc>, window_params = [{transform_indices = @transform_0, window_bounds = array<i64: 64, 256>}, {transform_indices = @transform_1, window_bounds = array<i64: 64, 256>}, {transform_indices = @transform_2, window_bounds = array<i64: 64, 1>}]} {
    %c0 = arith.constant 0 : index
    %c0_0 = arith.constant 0 : index
    %0 = vector.load %arg1[%c0, %c0_0] : memref<64x256xf32, #tpu.memory_space<vmem>>, vector<64x256xf32>
    %1 = math.absf %0 : vector<64x256xf32>
    %cst = arith.constant dense<0xFF800000> : vector<64xf32>
    %2 = vector.multi_reduction <maximumf>, %1, %cst [1] : vector<64x256xf32> to vector<64xf32>
    %3 = vector.shape_cast %2 : vector<64xf32> to vector<64x1xf32>
    %cst_1 = arith.constant 9.99999974E-6 : f32
    %4 = vector.broadcast %cst_1 : f32 to vector<64x1xf32>
    %5 = arith.maximumf %3, %4 : vector<64x1xf32>
    %cst_2 = arith.constant 1.270000e+02 : f32
    %6 = vector.broadcast %cst_2 : f32 to vector<64x1xf32>
    %7 = arith.divf %6, %5 : vector<64x1xf32>
    %8 = vector.broadcast %7 : vector<64x1xf32> to vector<64x256xf32>
    %9 = arith.mulf %0, %8 : vector<64x256xf32>
    %10 = math.roundeven %9 : vector<64x256xf32>
    %cst_3 = arith.constant -1.270000e+02 : f32
    %cst_4 = arith.constant 1.270000e+02 : f32
    %11 = vector.broadcast %cst_3 : f32 to vector<64x256xf32>
    %12 = arith.maximumf %11, %10 : vector<64x256xf32>
    %13 = vector.broadcast %cst_4 : f32 to vector<64x256xf32>
    %14 = arith.minimumf %13, %12 : vector<64x256xf32>
    %15 = arith.fptosi %14 : vector<64x256xf32> to vector<64x256xi8>
    %c0_5 = arith.constant 0 : index
    %c0_6 = arith.constant 0 : index
    %16 = vector.load %arg2[%c0_5, %c0_6] : memref<64x256xi8, #tpu.memory_space<vmem>>, vector<64x256xi8>
    tpu.vector_store %arg2[%c0_5, %c0_6], %15 {strides = array<i32>} : memref<64x256xi8, #tpu.memory_space<vmem>>, vector<64x256xi8>,
    %cst_7 = arith.constant 0.00787401571 : f32
    %17 = vector.broadcast %cst_7 : f32 to vector<64x1xf32>
    %18 = arith.mulf %5, %17 : vector<64x1xf32>
    %c0_8 = arith.constant 0 : index
    %c0_9 = arith.constant 0 : index
    %19 = vector.load %arg3[%c0_8, %c0_9] : memref<64x1xf32, #tpu.memory_space<vmem>>, vector<64x1xf32>
    tpu.vector_store %arg3[%c0_8, %c0_9], %18 {strides = array<i32>} : memref<64x1xf32, #tpu.memory_space<vmem>>, vector<64x1xf32>,
    return
  }
  func.func @transform_0(%arg0: i32) -> (i32, i32) {
    %c0_i32 = arith.constant 0 : i32
    %c0_i32_0 = arith.constant 0 : i32
    return %arg0, %c0_i32 : i32, i32
  }
  func.func @transform_1(%arg0: i32) -> (i32, i32) {
    %c0_i32 = arith.constant 0 : i32
    %c0_i32_0 = arith.constant 0 : i32
    return %arg0, %c0_i32 : i32, i32
  }
  func.func @transform_2(%arg0: i32) -> (i32, i32) {
    %c0_i32 = arith.constant 0 : i32
    %c0_i32_0 = arith.constant 0 : i32
    return %arg0, %c0_i32 : i32, i32
  }
}

</mosaic_0001>

<llo_original>
// kernel: tpu_custom_call.1
$region0: #{tpu_custom_call.1}
  #allocation0 [shape = 'u32[]', space=smem, size = 0x4, offset = 0x4, fixed_abs, tag = 'smem constant byte address 0x4 - core index']
  #allocation1 [shape = 'u32[144,128]{1,0:T(1,128)}', space=vmem, size = 0x12000, scoped, tag = 'internal scratch']
  %s0 = inlined_call_operand.hbm [shape: f32[64,256], index: 0, kind: input, shape index: {}]
  %s1 = inlined_call_operand.hbm [shape: s8[64,256], index: 1, kind: output, shape index: {0}]
  %s2 = inlined_call_operand.vmem [shape: f32[64,1], index: 2, kind: output, shape index: {1}]
  %3 = xla_tuple %s1, %s2
  %s4 = sld [smem:[#allocation0]]
  $region26: #{tpu_custom_call.1} parent=0
    _
  %s6 = ssub.s32 1, %s4
  %s7 = scalar_select 0, %s6, %s4
  $region1: #{tpu_custom_call.1} parent=0
    #allocation2 [shape = 'u8[65536]{0}', space=vmem, size = 0x10000, scoped, tag = 'input window, operand 0, single buffered']
    #allocation3 [shape = 's32[1]{0}', space=sflag, size = 0x4, scoped, tag = 'scoped memory for tpu_custom_call.1']
    #allocation4 [shape = 's32[1]{0}', space=sflag, size = 0x4, scoped, tag = 'scoped memory for tpu_custom_call.1']
    #allocation5 [shape = 'u8[16384]{0}', space=vmem, size = 0x4000, scoped, tag = 'output window, operand 0, single buffered']
    %8 = vsyncpa [#allocation3], 0
    %9 = vsyncpa [#allocation4], 0
    // Predicated region
    $region2: #{tpu_custom_call.1} parent=1 // pred_check
      _
    $region3: #{tpu_custom_call.1} parent=1 // pred_check_branch
      %11 = sbr.rel (0) target = $region5
    $region4: #{tpu_custom_call.1} parent=1 // pred_region
      %s13 = ssub.s32 2048, 2048
      %14 = vsyncadd [#allocation3], %s13
      %s15 = sshll.u32 [#allocation2], 4
      %s16 = int_to_ptr.vmem [resolvable:$true] %s15
      %21 = dma.hbm_to_vmem [thread:$0]  %s0, 2048, %s16, [#allocation3], 256, 256, 16
    $region5: #{tpu_custom_call.1} parent=1 // pred_fallthru
      _
    // Predicated region
    $region6: #{tpu_custom_call.1} parent=1 // pred_check
      _
    $region7: #{tpu_custom_call.1} parent=1 // pred_check_branch
      %23 = sbr.rel (0) target = $region9
    $region8: #{tpu_custom_call.1} parent=1 // pred_region
      %24 = dma.done [#allocation3], 2048
    $region9: #{tpu_custom_call.1} parent=1 // pred_fallthru
      _
    %v25 = vld [vmem:[#allocation2] sm:$0xff]
    %v26 = vld [vmem:[#allocation2 + $0x8] sm:$0xff]
    %v27 = vld [vmem:[#allocation2 + $0x10] sm:$0xff]
    %v28 = vld [vmem:[#allocation2 + $0x18] sm:$0xff]
    %v29 = vld [vmem:[#allocation2 + $0x20] sm:$0xff]
    %v30 = vld [vmem:[#allocation2 + $0x28] sm:$0xff]
    %v31 = vld [vmem:[#allocation2 + $0x30] sm:$0xff]
    %v32 = vld [vmem:[#allocation2 + $0x38] sm:$0xff]
    %v33 = vld [vmem:[#allocation2 + $0x40] sm:$0xff]
    %v34 = vld [vmem:[#allocation2 + $0x48] sm:$0xff]
    %v35 = vld [vmem:[#allocation2 + $0x50] sm:$0xff]
    %v36 = vld [vmem:[#allocation2 + $0x58] sm:$0xff]
    %v37 = vld [vmem:[#allocation2 + $0x60] sm:$0xff]
    %v38 = vld [vmem:[#allocation2 + $0x68] sm:$0xff]
    %v39 = vld [vmem:[#allocation2 + $0x70] sm:$0xff]
    %v40 = vld [vmem:[#allocation2 + $0x78] sm:$0xff]
    %v41 = vand.u32 2147483647, %v25
    %v42 = vand.u32 2147483647, %v26
    %v43 = vand.u32 2147483647, %v27
    %v44 = vand.u32 2147483647, %v28
    %v45 = vand.u32 2147483647, %v29
    %v46 = vand.u32 2147483647, %v30
    %v47 = vand.u32 2147483647, %v31
    %v48 = vand.u32 2147483647, %v32
    %v49 = vand.u32 2147483647, %v33
    %v50 = vand.u32 2147483647, %v34
    %v51 = vand.u32 2147483647, %v35
    %v52 = vand.u32 2147483647, %v36
    %v53 = vand.u32 2147483647, %v37
    %v54 = vand.u32 2147483647, %v38
    %v55 = vand.u32 2147483647, %v39
    %v56 = vand.u32 2147483647, %v40
    %v57 = vmax.f32 %v41, %v42
    %58 = vmax.xlane.f32.xlu0 %v57
    %v59 = vpop.xlane.xlu0 %58
    %v60 = vmax.f32 %v43, %v44
    %61 = vmax.xlane.f32.xlu0 %v60
    %v62 = vpop.xlane.xlu0 %61
    %v63 = vmax.f32 %v45, %v46
    %64 = vmax.xlane.f32.xlu0 %v63
    %v65 = vpop.xlane.xlu0 %64
    %v66 = vmax.f32 %v47, %v48
    %67 = vmax.xlane.f32.xlu0 %v66
    %v68 = vpop.xlane.xlu0 %67
    %v69 = vmax.f32 %v49, %v50
    %70 = vmax.xlane.f32.xlu0 %v69
    %v71 = vpop.xlane.xlu0 %70
    %v72 = vmax.f32 %v51, %v52
    %73 = vmax.xlane.f32.xlu0 %v72
    %v74 = vpop.xlane.xlu0 %73
    %v75 = vmax.f32 %v53, %v54
    %76 = vmax.xlane.f32.xlu0 %v75
    %v77 = vpop.xlane.xlu0 %76
    %v78 = vmax.f32 %v55, %v56
    %79 = vmax.xlane.f32.xlu0 %v78
    %v80 = vpop.xlane.xlu0 %79
    %v81 = vmax.f32 %v59, 1e-05
    %v82 = vmax.f32 %v62, 1e-05
    %v83 = vmax.f32 %v65, 1e-05
    %v84 = vmax.f32 %v68, 1e-05
    %v85 = vmax.f32 %v71, 1e-05
    %v86 = vmax.f32 %v74, 1e-05
    %v87 = vmax.f32 %v77, 1e-05
    %v88 = vmax.f32 %v80, 1e-05
    %v89 = vrcp.pop %v81
    %v90 = vmul.f32 127.0, %v89
    %v91 = vrcp.pop %v82
    %v92 = vmul.f32 127.0, %v91
    %v93 = vrcp.pop %v83
    %v94 = vmul.f32 127.0, %v93
    %v95 = vrcp.pop %v84
    %v96 = vmul.f32 127.0, %v95
    %v97 = vrcp.pop %v85
    %v98 = vmul.f32 127.0, %v97
    %v99 = vrcp.pop %v86
    %v100 = vmul.f32 127.0, %v99
    %v101 = vrcp.pop %v87
    %v102 = vmul.f32 127.0, %v101
    %v103 = vrcp.pop %v88
    %v104 = vmul.f32 127.0, %v103
    %v105 = vmul.f32 %v25, %v90
    %v106 = vmul.f32 %v26, %v90
    %v107 = vmul.f32 %v27, %v92
    %v108 = vmul.f32 %v28, %v92
    %v109 = vmul.f32 %v29, %v94
    %v110 = vmul.f32 %v30, %v94
    %v111 = vmul.f32 %v31, %v96
    %v112 = vmul.f32 %v32, %v96
    %v113 = vmul.f32 %v33, %v98
    %v114 = vmul.f32 %v34, %v98
    %v115 = vmul.f32 %v35, %v100
    %v116 = vmul.f32 %v36, %v100
    %v117 = vmul.f32 %v37, %v102
    %v118 = vmul.f32 %v38, %v102
    %v119 = vmul.f32 %v39, %v104
    %v120 = vmul.f32 %v40, %v104
    %v121 = vround.ne.pseudo %v105
    %v122 = vround.ne.pseudo %v106
    %v123 = vround.ne.pseudo %v107
    %v124 = vround.ne.pseudo %v108
    %v125 = vround.ne.pseudo %v109
    %v126 = vround.ne.pseudo %v110
    %v127 = vround.ne.pseudo %v111
    %v128 = vround.ne.pseudo %v112
    %v129 = vround.ne.pseudo %v113
    %v130 = vround.ne.pseudo %v114
    %v131 = vround.ne.pseudo %v115
    %v132 = vround.ne.pseudo %v116
    %v133 = vround.ne.pseudo %v117
    %v134 = vround.ne.pseudo %v118
    %v135 = vround.ne.pseudo %v119
    %v136 = vround.ne.pseudo %v120
    %v137 = vmax.f32 %v121, -127.0
    %v138 = vmax.f32 %v122, -127.0
    %v139 = vmax.f32 %v123, -127.0
    %v140 = vmax.f32 %v124, -127.0
    %v141 = vmax.f32 %v125, -127.0
    %v142 = vmax.f32 %v126, -127.0
    %v143 = vmax.f32 %v127, -127.0
    %v144 = vmax.f32 %v128, -127.0
    %v145 = vmax.f32 %v129, -127.0
    %v146 = vmax.f32 %v130, -127.0
    %v147 = vmax.f32 %v131, -127.0
    %v148 = vmax.f32 %v132, -127.0
    %v149 = vmax.f32 %v133, -127.0
    %v150 = vmax.f32 %v134, -127.0
    %v151 = vmax.f32 %v135, -127.0
    %v152 = vmax.f32 %v136, -127.0
    %v153 = vmin.f32 %v137, 127.0
    %v154 = vmin.f32 %v138, 127.0
    %v155 = vmin.f32 %v139, 127.0
    %v156 = vmin.f32 %v140, 127.0
    %v157 = vmin.f32 %v141, 127.0
    %v158 = vmin.f32 %v142, 127.0
    %v159 = vmin.f32 %v143, 127.0
    %v160 = vmin.f32 %v144, 127.0
    %v161 = vmin.f32 %v145, 127.0
    %v162 = vmin.f32 %v146, 127.0
    %v163 = vmin.f32 %v147, 127.0
    %v164 = vmin.f32 %v148, 127.0
    %v165 = vmin.f32 %v149, 127.0
    %v166 = vmin.f32 %v150, 127.0
    %v167 = vmin.f32 %v151, 127.0
    %v168 = vmin.f32 %v152, 127.0
    %v169 = vtrunc.f32 %v153
    %v170 = vtrunc.f32 %v154
    %v171 = vtrunc.f32 %v155
    %v172 = vtrunc.f32 %v156
    %v173 = vtrunc.f32 %v157
    %v174 = vtrunc.f32 %v158
    %v175 = vtrunc.f32 %v159
    %v176 = vtrunc.f32 %v160
    %v177 = vtrunc.f32 %v161
    %v178 = vtrunc.f32 %v162
    %v179 = vtrunc.f32 %v163
    %v180 = vtrunc.f32 %v164
    %v181 = vtrunc.f32 %v165
    %v182 = vtrunc.f32 %v166
    %v183 = vtrunc.f32 %v167
    %v184 = vtrunc.f32 %v168
    %v185 = vpack.c.f32.eXmY %v169, %v171, 312
    %v189 = vpack.c.f32.eXmY %v173, %v175, 312
    %v193 = vpack.c.b8 %v189, %v185
    %v195 = vpack.c.f32.eXmY %v170, %v172, 312
    %v199 = vpack.c.f32.eXmY %v174, %v176, 312
    %v203 = vpack.c.b8 %v199, %v195
    %v205 = vpack.c.f32.eXmY %v177, %v179, 312
    %v209 = vpack.c.f32.eXmY %v181, %v183, 312
    %v213 = vpack.c.b8 %v209, %v205
    %v215 = vpack.c.f32.eXmY %v178, %v180, 312
    %v219 = vpack.c.f32.eXmY %v182, %v184, 312
    %v223 = vpack.c.b8 %v219, %v215
    %225 = vst [vmem:[#allocation5] sm:$0xff] %v193
    %226 = vst [vmem:[#allocation5 + $0x8] sm:$0xff] %v203
    %227 = vst [vmem:[#allocation5 + $0x10] sm:$0xff] %v213
    %228 = vst [vmem:[#allocation5 + $0x18] sm:$0xff] %v223
    %v229 = vmul.f32 %v81, 0.007874016
    %v230 = vmul.f32 %v82, 0.007874016
    %v231 = vmul.f32 %v83, 0.007874016
    %v232 = vmul.f32 %v84, 0.007874016
    %v233 = vmul.f32 %v85, 0.007874016
    %v234 = vmul.f32 %v86, 0.007874016
    %v235 = vmul.f32 %v87, 0.007874016
    %v236 = vmul.f32 %v88, 0.007874016
    %vm237 = vcmask 7168
    %238 = vst.msk [vmem:[%s2] sm:$0xff] %vm237, %v229
    %239 = vst.msk [vmem:[%s2 + $0x8] sm:$0xff] %vm237, %v230
    %240 = vst.msk [vmem:[%s2 + $0x10] sm:$0xff] %vm237, %v231
    %241 = vst.msk [vmem:[%s2 + $0x18] sm:$0xff] %vm237, %v232
    %242 = vst.msk [vmem:[%s2 + $0x20] sm:$0xff] %vm237, %v233
    %243 = vst.msk [vmem:[%s2 + $0x28] sm:$0xff] %vm237, %v234
    %244 = vst.msk [vmem:[%s2 + $0x30] sm:$0xff] %vm237, %v235
    %245 = vst.msk [vmem:[%s2 + $0x38] sm:$0xff] %vm237, %v236
    // Predicated region
    $region10: #{tpu_custom_call.1} parent=1 // pred_check
      _
    $region11: #{tpu_custom_call.1} parent=1 // pred_check_branch
      %247 = sbr.rel (0) target = $region13
    $region12: #{tpu_custom_call.1} parent=1 // pred_region
      %s249 = ssub.s32 512, 512
      %250 = vsyncadd [#allocation4], %s249
      %s251 = sshll.u32 [#allocation5], 4
      %s252 = int_to_ptr.vmem [resolvable:$true] %s251
      %257 = dma.vmem_to_hbm [thread:$0]  %s252, 512, %s1, [#allocation4], 256, 256, 16
    $region13: #{tpu_custom_call.1} parent=1 // pred_fallthru
      _
    // Predicated region
    $region14: #{tpu_custom_call.1} parent=1 // pred_check
      _
    $region15: #{tpu_custom_call.1} parent=1 // pred_check_branch
      %259 = sbr.rel (0) target = $region17
    $region16: #{tpu_custom_call.1} parent=1 // pred_region
      _
    $region17: #{tpu_custom_call.1} parent=1 // pred_fallthru
      _
    // Predicated region
    $region18: #{tpu_custom_call.1} parent=1 // pred_check
      _
    $region19: #{tpu_custom_call.1} parent=1 // pred_check_branch
      %261 = sbr.rel (0) target = $region21
    $region20: #{tpu_custom_call.1} parent=1 // pred_region
      %262 = dma.done [#allocation4], 512
    $region21: #{tpu_custom_call.1} parent=1 // pred_fallthru
      _
    // Predicated region
    $region22: #{tpu_custom_call.1} parent=1 // pred_check
      _
    $region23: #{tpu_custom_call.1} parent=1 // pred_check_branch
      %264 = sbr.rel (0) target = $region25
    $region24: #{tpu_custom_call.1} parent=1 // pred_region
      _
    $region25: #{tpu_custom_call.1} parent=1 // pred_fallthru
      _
    %265 = vsyncpa [#allocation3], 1
    %266 = vsyncpa [#allocation4], 1

</llo_original>
